<compile_context>
chip_gen: v7x
topology: tpu7x:2x2x1
jax: 0.10.0
libtpu: 0.0.40
codegen_flags: <defaults>
</compile_context>

<pallas_src>
from typing import NamedTuple, Tuple

import jax
import jax.numpy as jnp
from jax.experimental import pallas as pl
from jax.experimental.pallas import tpu as pltpu


def _round_up(x: int, m: int) -> int:
    return ((x + m - 1) // m) * m


# ---------------------------------------------------------------------------
# Kernel
# ---------------------------------------------------------------------------
def _template_bank_kernel(coeff_ref, templates_ref, out_ref):
    # coeff_ref:     (T,)          f32        in SMEM (whole array, untiled)
    # templates_ref: (T, TR, 128)  bf16/f32   in VMEM (one full M-tile of the bank)
    # out_ref:       (TR, 128)     f32        in VMEM
    #
    # Register-accumulate chain: each output vreg is written exactly once
    # (do NOT rewrite as per-t read-modify-write of out_ref; on v5e that would
    # make the single vst slot the binder instead of HBM).
    T = templates_ref.shape[0]
    acc = coeff_ref[0] * templates_ref[0].astype(jnp.float32)
    for t in range(1, T):  # T is small (4-16): fully unrolled VPU FMA chain
        acc = acc + coeff_ref[t] * templates_ref[t].astype(jnp.float32)
    # TODO(synk): if a v7x bundle dump shows the 4-wide VALU slot saturating
    # after the bf16 storage change (cast+mul+add per loaded element at
    # 3.2 TB/s), move the T-contraction to the idle MXU (dot_general) or do the
    # multiply in bf16; on v5e/v6e the VPU has ample slack so this stays as-is.
    out_ref[...] = acc


# ---------------------------------------------------------------------------
# Generation-aware configuration
# ---------------------------------------------------------------------------
def _vmem_config() -> Tuple[int, int]:
    """Returns (input_budget_bytes, vmem_limit_bytes) for the current TPU gen."""
    cap = None
    try:
        info = pltpu.get_tpu_info()
        cap = getattr(info, "vmem_capacity_bytes", None)
    except Exception:
        cap = None
    if cap is not None and cap >= 100 * 1024 * 1024:
        # v5e / v6e: 128 MiB physical VMEM -> larger tiles amortize per-step
        # overhead and DMA descriptor count.
        return 16 * 1024 * 1024, 64 * 1024 * 1024
    # v7x-class (64 MiB per TC) or unknown: stay conservative.
    return 8 * 1024 * 1024, 32 * 1024 * 1024


def _auto_tile_rows(T: int, R: int, itemsize: int, budget_bytes: int) -> int:
    """Pick TR (multiple of 8) for the M-tiling.

    Constraints (in priority order):
      * double-buffered input block (2 * T * TR * 128 * itemsize) <= budget
      * TR >= 512 rows so each of the T strided DMA segments stays large
        (small tiles measured at ~30% of HBM roofline vs ~85%+ at MiB scale)
      * aim for >= 4 grid steps on large banks (v7x 2-TC split + DMA overlap)
    """
    cap = budget_bytes // (2 * T * 128 * itemsize)
    cap = max(8, (cap // 8) * 8)
    target = max(512, _round_up(pl.cdiv(R, 4), 8))  # grid >= ~4 once R >= 2048
    tr = min(cap, target, _round_up(R, 8))
    return max(8, tr)


# ---------------------------------------------------------------------------
# One-time packing (hoisted out of the forward path)
# ---------------------------------------------------------------------------
class PackedTemplateBank(NamedTuple):
    packed: jax.Array            # (T, Rp, 128) in pack_dtype, zero-padded tail
    out_shape: Tuple[int, int, int, int]
    num_valid: int               # out_planes * in_planes * k * k
    tile_rows: int               # TR; Rp is an exact multiple of TR
    vmem_limit_bytes: int


def prepare_templates(
    templates,
    *,
    pack_dtype=jnp.bfloat16,
    tile_rows=None,
    budget_bytes=None,
    vmem_limit_bytes=None,
) -> PackedTemplateBank:
    """Pack the bank (T, O, I, k, k) -> (T, Rp, 128), zero padded, lane-dense.

    Do this at parameter-init / load time, NOT per forward call. bf16 storage
    (default) halves HBM traffic; results then differ from the f32 PyTorch
    reference by O(bf16 eps * T), which is tiny for T <= 16.
    """
    T, out_planes, in_planes, kh, kw = templates.shape
    M = out_planes * in_planes * kh * kw
    R = pl.cdiv(M, 128)
    itemsize = jnp.dtype(pack_dtype).itemsize

    auto_budget, auto_limit = _vmem_config()
    budget = auto_budget if budget_bytes is None else budget_bytes
    limit = auto_limit if vmem_limit_bytes is None else vmem_limit_bytes

    if tile_rows is not None:
        if tile_rows % 8 != 0:
            raise ValueError("tile_rows must be a multiple of 8 (TPU sublane tiling)")
        TR = int(tile_rows)
    else:
        TR = _auto_tile_rows(T, R, itemsize, budget)

    # Pad R up to a multiple of TR so every grid block is full (unmasked vst,
    # even TC split).
    Rp = _round_up(R, TR)
    M_pad = Rp * 128

    flat = templates.reshape(T, M).astype(pack_dtype)
    if M_pad != M:
        flat = jnp.pad(flat, ((0, 0), (0, M_pad - M)))
    packed = flat.reshape(T, Rp, 128)

    return PackedTemplateBank(
        packed=packed,
        out_shape=(out_planes, in_planes, kh, kw),
        num_valid=M,
        tile_rows=TR,
        vmem_limit_bytes=limit,
    )


# ---------------------------------------------------------------------------
# Forward
# ---------------------------------------------------------------------------
def template_bank_forward(
    bank: PackedTemplateBank,
    coefficients,
    *,
    min_bytes_for_pallas=1 << 20,
):
    """Weighted sum of a pre-packed template bank.

    coefficients: (T, 1, 1, 1, 1) (or anything reshapeable to (T,))
    returns:      (out_planes, in_planes, k, k) float32
    """
    packed = bank.packed
    T, Rp, _ = packed.shape
    itemsize = packed.dtype.itemsize
    coeff = coefficients.reshape(T).astype(jnp.float32)

    if packed.size * itemsize < min_bytes_for_pallas:
        # Tiny bank: per-grid-step + launch overhead dwarfs the work; let XLA fuse.
        flat = jnp.einsum("t,trl->rl", coeff, packed.astype(jnp.float32))
    else:
        TR = bank.tile_rows
        grid = (Rp // TR,)  # exact: Rp is padded to a multiple of TR
        cost = pl.CostEstimate(
            flops=2 * T * Rp * 128,
            transcendentals=0,
            bytes_accessed=T * Rp * 128 * itemsize + Rp * 128 * 4 + T * 4,
        )
        flat = pl.pallas_call(
            _template_bank_kernel,
            out_shape=jax.ShapeDtypeStruct((Rp, 128), jnp.float32),
            grid_spec=pl.GridSpec(
                grid=grid,
                in_specs=[
                    # Coefficients: a few scalars, keep them in SMEM.
                    pl.BlockSpec(memory_space=pltpu.MemorySpace.SMEM),
                    # One lane-dense, always-full M-tile of the bank per grid step.
                    # (2-deep buffering is enough for pure streaming; sweep
                    #  pipeline_mode=pl.Buffered(3) only if xprof shows DMA gaps.)
                    pl.BlockSpec((T, TR, 128), lambda i: (0, i, 0)),
                ],
                out_specs=pl.BlockSpec((TR, 128), lambda i: (i, 0)),
            ),
            compiler_params=pltpu.CompilerParams(
                dimension_semantics=("parallel",),
                vmem_limit_bytes=bank.vmem_limit_bytes,
            ),
            cost_estimate=cost,
        )(coeff, packed)

    return flat.reshape(-1)[: bank.num_valid].reshape(bank.out_shape)


def init_templates(key, num_templates, in_planes, out_planes, kernel_size):
    # kaiming_normal_ default: mode='fan_in', nonlinearity='leaky_relu' (a=0)
    # => gain = sqrt(2), std = sqrt(2 / fan_in), fan_in = in_planes * k * k
    fan_in = in_planes * kernel_size * kernel_size
    std = (2.0 / fan_in) ** 0.5
    shape = (num_templates, out_planes, in_planes, kernel_size, kernel_size)
    return jax.random.normal(key, shape, dtype=jnp.float32) * std


# ---------------------------------------------------------------------------
# Demo / correctness check
# ---------------------------------------------------------------------------
if __name__ == "__main__":
    num_templates = 4
    in_planes = 16
    out_planes = 32
    kernel_size = 3

    key = jax.random.PRNGKey(0)
    k_templates, k_coeff = jax.random.split(key)

    templates = init_templates(
        k_templates, num_templates, in_planes, out_planes, kernel_size
    )
    coefficients = jax.random.normal(
        k_coeff, (num_templates, 1, 1, 1, 1), dtype=jnp.float32
    )

    # Reference in plain JAX (same semantics as the PyTorch forward).
    ref = jnp.sum(templates * coefficients, axis=0)

    # bf16-packed bank (production default). Force the Pallas path at this tiny
    # demo size and use a small full-dividing tile (TR=16 -> Rp=48, grid of 3
    # full blocks) so several grid steps are exercised. Production sizes use
    # the auto TR (>=512 rows, ~4+ steps).
    bank_bf16 = prepare_templates(templates, tile_rows=16)
    out_bf16 = template_bank_forward(bank_bf16, coefficients, min_bytes_for_pallas=0)
    out_bf16 = jax.block_until_ready(out_bf16)
    assert out_bf16.shape == (out_planes, in_planes, kernel_size, kernel_size)
    assert jnp.allclose(out_bf16, ref, atol=2e-2, rtol=2e-2)

    # f32-packed bank: bit-exact vs. the PyTorch-style f32 reference.
    bank_f32 = prepare_templates(templates, pack_dtype=jnp.float32, tile_rows=16)
    out_f32 = template_bank_forward(bank_f32, coefficients, min_bytes_for_pallas=0)
    out_f32 = jax.block_until_ready(out_f32)
    assert jnp.allclose(out_f32, ref, atol=1e-5, rtol=1e-5)

    # Tiny-bank einsum fallback path.
    out_small = template_bank_forward(
        bank_bf16, coefficients, min_bytes_for_pallas=1 << 30
    )
    out_small = jax.block_until_ready(out_small)
    assert jnp.allclose(out_small, ref, atol=2e-2, rtol=2e-2)

    print("KERNEL_OK")
</pallas_src>

<mosaic_0001>
module attributes {stable_mosaic.version = 11 : i64} {
  func.func @_template_bank_kernel(%arg0: i32, %arg1: memref<4xf32, #tpu.memory_space<smem>>, %arg2: memref<4x16x128xbf16, #tpu.memory_space<vmem>>, %arg3: memref<16x128xf32, #tpu.memory_space<vmem>>) attributes {dimension_semantics = [#tpu.dimension_semantics<parallel>], iteration_bounds = array<i64: 3>, scalar_prefetch = 0 : i64, scratch_operands = 0 : i64, tpu.core_type = #tpu.core_type<tc>, window_params = [{transform_indices = @transform_0, window_bounds = array<i64: 4>}, {transform_indices = @transform_1, window_bounds = array<i64: 4, 16, 128>}, {transform_indices = @transform_2, window_bounds = array<i64: 16, 128>}]} {
    %c0 = arith.constant 0 : index
    %0 = memref.load %arg1[%c0] : memref<4xf32, #tpu.memory_space<smem>>
    %c0_0 = arith.constant 0 : index
    %c0_1 = arith.constant 0 : index
    %c0_2 = arith.constant 0 : index
    %1 = vector.load %arg2[%c0_0, %c0_1, %c0_2] : memref<4x16x128xbf16, #tpu.memory_space<vmem>>, vector<1x16x128xbf16>
    %2 = vector.shape_cast %1 : vector<1x16x128xbf16> to vector<16x128xbf16>
    %3 = arith.extf %2 : vector<16x128xbf16> to vector<16x128xf32>
    %4 = vector.broadcast %0 : f32 to vector<16x128xf32>
    %5 = arith.mulf %4, %3 : vector<16x128xf32>
    %c1 = arith.constant 1 : index
    %6 = memref.load %arg1[%c1] : memref<4xf32, #tpu.memory_space<smem>>
    %c1_3 = arith.constant 1 : index
    %c0_4 = arith.constant 0 : index
    %c0_5 = arith.constant 0 : index
    %7 = vector.load %arg2[%c1_3, %c0_4, %c0_5] : memref<4x16x128xbf16, #tpu.memory_space<vmem>>, vector<1x16x128xbf16>
    %8 = vector.shape_cast %7 : vector<1x16x128xbf16> to vector<16x128xbf16>
    %9 = arith.extf %8 : vector<16x128xbf16> to vector<16x128xf32>
    %10 = vector.broadcast %6 : f32 to vector<16x128xf32>
    %11 = arith.mulf %10, %9 : vector<16x128xf32>
    %12 = arith.addf %5, %11 : vector<16x128xf32>
    %c2 = arith.constant 2 : index
    %13 = memref.load %arg1[%c2] : memref<4xf32, #tpu.memory_space<smem>>
    %c2_6 = arith.constant 2 : index
    %c0_7 = arith.constant 0 : index
    %c0_8 = arith.constant 0 : index
    %14 = vector.load %arg2[%c2_6, %c0_7, %c0_8] : memref<4x16x128xbf16, #tpu.memory_space<vmem>>, vector<1x16x128xbf16>
    %15 = vector.shape_cast %14 : vector<1x16x128xbf16> to vector<16x128xbf16>
    %16 = arith.extf %15 : vector<16x128xbf16> to vector<16x128xf32>
    %17 = vector.broadcast %13 : f32 to vector<16x128xf32>
    %18 = arith.mulf %17, %16 : vector<16x128xf32>
    %19 = arith.addf %12, %18 : vector<16x128xf32>
    %c3 = arith.constant 3 : index
    %20 = memref.load %arg1[%c3] : memref<4xf32, #tpu.memory_space<smem>>
    %c3_9 = arith.constant 3 : index
    %c0_10 = arith.constant 0 : index
    %c0_11 = arith.constant 0 : index
    %21 = vector.load %arg2[%c3_9, %c0_10, %c0_11] : memref<4x16x128xbf16, #tpu.memory_space<vmem>>, vector<1x16x128xbf16>
    %22 = vector.shape_cast %21 : vector<1x16x128xbf16> to vector<16x128xbf16>
    %23 = arith.extf %22 : vector<16x128xbf16> to vector<16x128xf32>
    %24 = vector.broadcast %20 : f32 to vector<16x128xf32>
    %25 = arith.mulf %24, %23 : vector<16x128xf32>
    %26 = arith.addf %19, %25 : vector<16x128xf32>
    %c0_12 = arith.constant 0 : index
    %c0_13 = arith.constant 0 : index
    %27 = vector.load %arg3[%c0_12, %c0_13] : memref<16x128xf32, #tpu.memory_space<vmem>>, vector<16x128xf32>
    tpu.vector_store %arg3[%c0_12, %c0_13], %26 {strides = array<i32>} : memref<16x128xf32, #tpu.memory_space<vmem>>, vector<16x128xf32>,
    return
  }
  func.func @transform_0(%arg0: i32) -> i32 {
    %c0_i32 = arith.constant 0 : i32
    %c0_i32_0 = arith.constant 0 : i32
    return %c0_i32 : i32
  }
  func.func @transform_1(%arg0: i32) -> (i32, i32, i32) {
    %c0_i32 = arith.constant 0 : i32
    %c0_i32_0 = arith.constant 0 : i32
    %c0_i32_1 = arith.constant 0 : i32
    return %c0_i32, %arg0, %c0_i32_0 : i32, i32, i32
  }
  func.func @transform_2(%arg0: i32) -> (i32, i32) {
    %c0_i32 = arith.constant 0 : i32
    %c0_i32_0 = arith.constant 0 : i32
    return %arg0, %c0_i32 : i32, i32
  }
}

</mosaic_0001>

<llo_original>
// kernel: tpu_custom_call.1
$region0: #{tpu_custom_call.1}
  #allocation0 [shape = 'u32[]', space=smem, size = 0x4, offset = 0x4, fixed_abs, tag = 'smem constant byte address 0x4 - core index']
  #allocation1 [shape = 'u32[144,128]{1,0:T(1,128)}', space=vmem, size = 0x12000, scoped, tag = 'internal scratch']
  #allocation8 [shape = 's32[]', space=sflag, size = 0x4, offset = 0, fixed_abs, tag = 'sflag constant byte address 0x0 - dummy sync flag']
  %s0 = inlined_call_operand.hbm [shape: f32[4], index: 0, kind: input, shape index: {}]
  %s1 = inlined_call_operand.hbm [shape: bf16[4,48,128], index: 1, kind: input, shape index: {}]
  %s2 = inlined_call_operand.hbm [shape: f32[48,128], index: 2, kind: output, shape index: {}]
  %s3 = sld [smem:[#allocation0]]
  $region49: #{tpu_custom_call.1} parent=0
    _
  %s5 = ssub.s32 1, %s3
  %s6 = scalar_select 0, %s5, %s3
  $region1: #{tpu_custom_call.1} parent=0
    #allocation2 [shape = 'u8[512]{0}', space=smem, size = 0x200, scoped, tag = 'input window, operand 0, single buffered']
    #allocation3 [shape = 's32[2]{0}', space=sflag, size = 0x8, scoped, tag = 'scoped memory for tpu_custom_call.1']
    #allocation4 [shape = 's32[2]{0}', space=sflag, size = 0x8, scoped, tag = 'scoped memory for tpu_custom_call.1']
    #allocation5 [shape = 's32[2]{0}', space=sflag, size = 0x8, scoped, tag = 'scoped memory for tpu_custom_call.1']
    #allocation6 [shape = 'u8[32768]{0}', space=vmem, size = 0x8000, scoped, tag = 'input window, operand 1']
    #allocation7 [shape = 'u8[16384]{0}', space=vmem, size = 0x4000, scoped, tag = 'output window, operand 0']
    %7 = vsyncpa [#allocation5], 0
    %8 = vsyncpa [#allocation3], 0
    %s9 = scalar_lea.sflag [#allocation3], 1
    %10 = vsyncpa %s9, 0
    %11 = vsyncpa [#allocation4], 0
    %s12 = scalar_lea.sflag [#allocation4], 1
    %13 = vsyncpa %s12, 0
    loop: start=0, step=1, limit=5
    $region2: #{tpu_custom_call.1} parent=1 // loop_pre_header
      _
    $region3: #{tpu_custom_call.1} parent=1 // loop_header
      %s15 = sphi 0, %s19
      %p16 = scmp.ge.s32.totalorder %s15, 5
      %s23 = sphi 0, %s23
      %s25 = sphi 0, %s23
      %s26 = sphi 0, %s25
      %s40 = sphi 0, %s26
      %s46 = sphi 0, %s48
      %s49 = sphi 0, %s46
      %s50 = sphi 0, %s49
      %s66 = sphi 0, %s50
      %s72 = sphi 0, %s74
      %s75 = sphi 0, %s72
      %s76 = sphi 0, %s75
      %s92 = sphi 0, %s76
    $region4: #{tpu_custom_call.1} parent=1 // loop_header_branch
      %18 = sbr.rel (%p16) target = $region8
    $region5: #{tpu_custom_call.1} parent=1 // loop_body
      %s20 = ssub.s32 %s15, 1
      %s21 = ssub.s32 %s15, 2
      %s22 = sadd.s32 %s15, 1
      %s24 = sadd.s32 %s23, 1
      %p27 = scmp.eq.s32.totalorder %s15, 2
      %p28 = scmp.ne.s32.totalorder %s23, %s25
      %p29 = scmp.eq.s32.totalorder %s15, 0
      %p30 = por %p28, %p29
      %p31 = scmp.ne.s32.totalorder %s23, %s25
      %p32 = scmp.eq.s32.totalorder %s20, 2
      %p33 = por %p31, %p32
      %p34 = scmp.ne.s32.totalorder %s25, %s26
      %p35 = scmp.eq.s32.totalorder %s20, 0
      %p36 = por %p34, %p35
      %p37 = scmp.ne.s32.totalorder %s25, %s26
      %p38 = scmp.eq.s32.totalorder %s21, 2
      %p39 = por %p37, %p38
      %p41 = scmp.ne.s32.totalorder %s26, %s40
      %p42 = scmp.eq.s32.totalorder %s21, 0
      %p43 = por %p41, %p42
      %s44 = ssub.s32 %s15, %s22
      %p45 = scmp.eq.s32.totalorder %s44, 0
      %s47 = sadd.s32 %s46, 1
      %s48 = scalar_select %p45, %s46, %s47
      %p51 = pneg %p45
      %p52 = scmp.eq.s32.totalorder %s15, 2
      %p53 = por %p51, %p52
      %p54 = scmp.ne.s32.totalorder %s46, %s49
      %p55 = scmp.eq.s32.totalorder %s15, 0
      %p56 = por %p54, %p55
      %p57 = scmp.ne.s32.totalorder %s46, %s49
      %p58 = scmp.eq.s32.totalorder %s20, 2
      %p59 = por %p57, %p58
      %p60 = scmp.ne.s32.totalorder %s49, %s50
      %p61 = scmp.eq.s32.totalorder %s20, 0
      %p62 = por %p60, %p61
      %p63 = scmp.ne.s32.totalorder %s49, %s50
      %p64 = scmp.eq.s32.totalorder %s21, 2
      %p65 = por %p63, %p64
      %p67 = scmp.ne.s32.totalorder %s50, %s66
      %p68 = scmp.eq.s32.totalorder %s21, 0
      %p69 = por %p67, %p68
      %s70 = ssub.s32 %s15, %s22
      %p71 = scmp.eq.s32.totalorder %s70, 0
      %s73 = sadd.s32 %s72, 1
      %s74 = scalar_select %p71, %s72, %s73
      %p77 = pneg %p71
      %p78 = scmp.eq.s32.totalorder %s15, 2
      %p79 = por %p77, %p78
      %p80 = scmp.ne.s32.totalorder %s72, %s75
      %p81 = scmp.eq.s32.totalorder %s15, 0
      %p82 = por %p80, %p81
      %p83 = scmp.ne.s32.totalorder %s72, %s75
      %p84 = scmp.eq.s32.totalorder %s20, 2
      %p85 = por %p83, %p84
      %p86 = scmp.ne.s32.totalorder %s75, %s76
      %p87 = scmp.eq.s32.totalorder %s20, 0
      %p88 = por %p86, %p87
      %p89 = scmp.ne.s32.totalorder %s75, %s76
      %p90 = scmp.eq.s32.totalorder %s21, 2
      %p91 = por %p89, %p90
      %p93 = scmp.ne.s32.totalorder %s76, %s92
      %p94 = scmp.eq.s32.totalorder %s21, 0
      %p95 = por %p93, %p94
      %p96 = scmp.le.s32.totalorder 1, %s15
      %p97 = scmp.lt.s32.totalorder %s15, 4
      %p98 = pnand %p96, %p97
      %p99 = pneg %p98
      // Predicated region
      $region9: #{tpu_custom_call.1} parent=5 // pred_check
        _
      $region10: #{tpu_custom_call.1} parent=5 // pred_check_branch
        %101 = sbr.rel (%p98) target = $region12
      $region11: #{tpu_custom_call.1} parent=5 // pred_region
        %s102 = ssub.s32 %s15, 1
        // Predicated region
        $region13: #{tpu_custom_call.1} parent=11 // pred_check
          %p103 = pneg %p36
        $region14: #{tpu_custom_call.1} parent=11 // pred_check_branch
          %105 = sbr.rel (%p103) target = $region16
        $region15: #{tpu_custom_call.1} parent=11 // pred_region
          %s107 = ssub.s32 16, 16
          %108 = vsyncadd [#allocation5], %s107
          %111 = dma.hbm_to_smem %s0, 16, [#allocation2], [#allocation5]
        $region16: #{tpu_custom_call.1} parent=11 // pred_fallthru
          _
      $region12: #{tpu_custom_call.1} parent=5 // pred_fallthru
        _
      %p112 = scmp.lt.s32.totalorder %s15, 3
      // Predicated region
      $region17: #{tpu_custom_call.1} parent=5 // pred_check
        %p113 = pneg %p112
      $region18: #{tpu_custom_call.1} parent=5 // pred_check_branch
        %115 = sbr.rel (%p113) target = $region20
      $region19: #{tpu_custom_call.1} parent=5 // pred_region
        // Predicated region
        $region21: #{tpu_custom_call.1} parent=19 // pred_check
          %p116 = pneg %p56
        $region22: #{tpu_custom_call.1} parent=19 // pred_check_branch
          %118 = sbr.rel (%p116) target = $region24
        $region23: #{tpu_custom_call.1} parent=19 // pred_region
          #allocation9 [shape = 'u32[6]{0}', space=smem, size = 0x18, scoped, tag = 'DMA stride descriptor']
          %s119 = sand.u32 %s46, 1
          %s120 = scalar_lea.sflag [#allocation3], %s119
          %s121 = sand.u32 %s46, 1
          %s122 = smul.addr %s121, 32
          %s123 = scalar_lea.vmem [#allocation6], %s122
          %s124 = smul.u32 2, %s15
          %s126 = ssub.s32 512, 512
          %127 = vsyncadd %s120, %s126
          %s128 = smul.addr %s124, 64
          %s129 = scalar_lea.hbm %s1, %s128
          %s131 = sshll.u32 1, 14
          %s132 = sxor.u32 4294967295, %s131
          %s134 = sld [smem:[#allocation0]]
          %s135 = sadd.s32 2, %s134
          %s137 = sshll.u32 7, 26
          %s138 = sxor.u32 4294967295, %s137
          %s139 = sand.u32 0, %s138
          %s140 = sshll.u32 %s135, 26
          %s141 = sor.u32 %s139, %s140
          %s142 = sshll.u32 %s123, 4
          %s143 = int_to_ptr.vmem [resolvable:$true] %s142
          %149 = sst [smem:[#allocation9]] 384
          %s150 = scalar_lea.smem [#allocation9], 1
          %151 = sst [smem:[%s150]] 128
          %s152 = scalar_lea.smem [#allocation9], 2
          %153 = sst [smem:[%s152]] 2
          %s154 = scalar_lea.smem [#allocation9], 3
          %155 = sst [smem:[%s154]] 64
          %s156 = scalar_lea.smem [#allocation9], 4
          %157 = sst [smem:[%s156]] 64
          %s158 = scalar_lea.smem [#allocation9], 5
          %159 = sst [smem:[%s158]] 4
          %161 = dma.general %s129, 512, %s143, %s120, [#allocation8], [#allocation9], %s141, 0
        $region24: #{tpu_custom_call.1} parent=19 // pred_fallthru
          _
      $region20: #{tpu_custom_call.1} parent=5 // pred_fallthru
        _
      %p162 = scmp.le.s32.totalorder 1, %s15
      %p163 = scmp.lt.s32.totalorder %s15, 4
      %p164 = pnand %p162, %p163
      %p165 = pneg %p164
      // Predicated region
      $region25: #{tpu_custom_call.1} parent=5 // pred_check
        _
      $region26: #{tpu_custom_call.1} parent=5 // pred_check_branch
        %167 = sbr.rel (%p164) target = $region28
      $region27: #{tpu_custom_call.1} parent=5 // pred_region
        %s168 = ssub.s32 %s15, 1
        // Predicated region
        $region29: #{tpu_custom_call.1} parent=27 // pred_check
          %p169 = pneg %p36
        $region30: #{tpu_custom_call.1} parent=27 // pred_check_branch
          %171 = sbr.rel (%p169) target = $region32
        $region31: #{tpu_custom_call.1} parent=27 // pred_region
          %172 = dma.done [#allocation5], 16
        $region32: #{tpu_custom_call.1} parent=27 // pred_fallthru
          _
        %s173 = sand.u32 %s49, 1
        %s174 = scalar_lea.sflag [#allocation3], %s173
        %s175 = sand.u32 %s49, 1
        %s176 = smul.addr %s175, 32
        %s177 = scalar_lea.vmem [#allocation6], %s176
        // Predicated region
        $region33: #{tpu_custom_call.1} parent=27 // pred_check
          %p178 = pneg %p62
        $region34: #{tpu_custom_call.1} parent=27 // pred_check_branch
          %180 = sbr.rel (%p178) target = $region36
        $region35: #{tpu_custom_call.1} parent=27 // pred_region
          %181 = dma.done %s174, 512
        $region36: #{tpu_custom_call.1} parent=27 // pred_fallthru
          _
        %182 = sfence
        %p183 = pneg %p36
        %p184 = pneg %p33
        %s185 = sand.u32 %s49, 1
        %s186 = scalar_lea.sflag [#allocation3], %s185
        %s187 = sand.u32 %s49, 1
        %s188 = smul.addr %s187, 32
        %s189 = scalar_lea.vmem [#allocation6], %s188
        %p190 = pneg %p62
        %p191 = pneg %p59
        %p192 = pneg %p88
        %p193 = pneg %p85
        %s194 = sand.u32 %s75, 1
        %s195 = scalar_lea.sflag [#allocation4], %s194
        %s196 = sand.u32 %s75, 1
        %s197 = smul.addr %s196, 16
        %s198 = scalar_lea.vmem [#allocation7], %s197
        %s199 = smul.u32 2, %s20
        %s200 = smul.u32 2, %s20
        %s201 = sld [smem:[#allocation2]]
        %v202 = vld [vmem:[%s177] sm:$0xf]
        %v203 = vld [vmem:[%s177 + $0x4] sm:$0xf]
        %v204 = vunpack.c.l.bf16 %v202
        %v205 = vunpack.c.l.bf16 %v203
        %v206 = vstv %s201
        %v207 = vmul.f32 %v206, %v204
        %v208 = vmul.f32 %v206, %v205
        %s209 = sld [smem:[#allocation2 + $0x1]]
        %s210 = scalar_lea.vmem %s177, 8 [#allocation6]
        %v211 = vld [vmem:[%s210] sm:$0xf]
        %v212 = vld [vmem:[%s210 + $0x4] sm:$0xf]
        %v213 = vunpack.c.l.bf16 %v211
        %v214 = vunpack.c.l.bf16 %v212
        %v215 = vstv %s209
        %v216 = vmul.f32 %v215, %v213
        %v217 = vmul.f32 %v215, %v214
        %v218 = vadd.f32 %v207, %v216
        %v219 = vadd.f32 %v208, %v217
        %s220 = sld [smem:[#allocation2 + $0x2]]
        %s221 = scalar_lea.vmem %s177, 16 [#allocation6]
        %v222 = vld [vmem:[%s221] sm:$0xf]
        %v223 = vld [vmem:[%s221 + $0x4] sm:$0xf]
        %v224 = vunpack.c.l.bf16 %v222
        %v225 = vunpack.c.l.bf16 %v223
        %v226 = vstv %s220
        %v227 = vmul.f32 %v226, %v224
        %v228 = vmul.f32 %v226, %v225
        %v229 = vadd.f32 %v218, %v227
        %v230 = vadd.f32 %v219, %v228
        %s231 = sld [smem:[#allocation2 + $0x3]]
        %s232 = scalar_lea.vmem %s177, 24 [#allocation6]
        %v233 = vld [vmem:[%s232] sm:$0xf]
        %v234 = vld [vmem:[%s232 + $0x4] sm:$0xf]
        %v235 = vunpack.c.l.bf16 %v233
        %v236 = vunpack.c.l.bf16 %v234
        %v237 = vstv %s231
        %v238 = vmul.f32 %v237, %v235
        %v239 = vmul.f32 %v237, %v236
        %v240 = vadd.f32 %v229, %v238
        %v241 = vadd.f32 %v230, %v239
        %242 = vst [vmem:[%s198] sm:$0xff] %v240
        %243 = vst [vmem:[%s198 + $0x8] sm:$0xff] %v241
        %s244 = sand.u32 %s75, 1
        %s245 = scalar_lea.sflag [#allocation4], %s244
        %s246 = sand.u32 %s75, 1
        %s247 = smul.addr %s246, 16
        %s248 = scalar_lea.vmem [#allocation7], %s247
        // Predicated region
        $region37: #{tpu_custom_call.1} parent=27 // pred_check
          %p249 = pneg %p85
        $region38: #{tpu_custom_call.1} parent=27 // pred_check_branch
          %251 = sbr.rel (%p249) target = $region40
        $region39: #{tpu_custom_call.1} parent=27 // pred_region
          %s252 = smul.u32 2, %s20
          %s254 = ssub.s32 256, 256
          %255 = vsyncadd %s245, %s254
          %s256 = smul.addr %s252, 128
          %s257 = scalar_lea.hbm %s2, %s256
          %s258 = sshll.u32 %s248, 4
          %s259 = int_to_ptr.vmem [resolvable:$true] %s258
          %264 = dma.vmem_to_hbm [thread:$0]  %s259, 256, %s257, %s245, 128, 128, 8
        $region40: #{tpu_custom_call.1} parent=27 // pred_fallthru
          _
      $region28: #{tpu_custom_call.1} parent=5 // pred_fallthru
        _
      %p265 = scmp.le.s32.totalorder 2, %s15
      // Predicated region
      $region41: #{tpu_custom_call.1} parent=5 // pred_check
        %p266 = pneg %p265
      $region42: #{tpu_custom_call.1} parent=5 // pred_check_branch
        %268 = sbr.rel (%p266) target = $region44
      $region43: #{tpu_custom_call.1} parent=5 // pred_region
        %s269 = ssub.s32 %s15, 2
        // Predicated region
        $region45: #{tpu_custom_call.1} parent=43 // pred_check
          %p270 = pneg %p91
        $region46: #{tpu_custom_call.1} parent=43 // pred_check_branch
          %272 = sbr.rel (%p270) target = $region48
        $region47: #{tpu_custom_call.1} parent=43 // pred_region
          %s273 = sand.u32 %s76, 1
          %s274 = scalar_lea.sflag [#allocation4], %s273
          %s275 = sand.u32 %s76, 1
          %s276 = smul.addr %s275, 16
          %s277 = scalar_lea.vmem [#allocation7], %s276
          %278 = dma.done %s274, 256
        $region48: #{tpu_custom_call.1} parent=43 // pred_fallthru
          _
      $region44: #{tpu_custom_call.1} parent=5 // pred_fallthru
        _
    $region6: #{tpu_custom_call.1} parent=1 // loop_footer
      %s19 = sadd.s32 1, %s15
    $region7: #{tpu_custom_call.1} parent=1 // loop_footer_branch
      %14 = sbr.rel target = $region3
    $region8: #{tpu_custom_call.1} parent=1 // loop_exit
      _
    %279 = vsyncpa [#allocation3], 1
    %s280 = scalar_lea.sflag [#allocation3], 1
    %281 = vsyncpa %s280, 1
    %282 = vsyncpa [#allocation4], 1
    %s283 = scalar_lea.sflag [#allocation4], 1
    %284 = vsyncpa %s283, 1
    %285 = vsyncpa [#allocation5], 1
    %s286 = scalar_lea.sflag [#allocation5], 1
    %287 = vsyncpa %s286, 1

</llo_original>
